<compile_context>
chip_gen: v6e
topology: v6e:2x2x1
jax: 0.10.0
libtpu: 0.0.40
codegen_flags: <defaults>
</compile_context>

<pallas_src>
import functools

import jax
import jax.numpy as jnp
from jax.experimental import pallas as pl
from jax.experimental.pallas import tpu as pltpu

_LANE = 128


def _round_up(x, m):
    return ((x + m - 1) // m) * m


def _sublane(itemsize):
    # native sublane packing per dtype width (f32 -> 8, bf16 -> 16, int8/fp8 -> 32)
    return {4: 8, 2: 16, 1: 32}.get(int(itemsize), 8)


def _vmem_capacity_bytes():
    try:
        cap = getattr(pltpu.get_tpu_info(), "vmem_capacity_bytes", None)
        if cap:
            return int(cap)
    except Exception:
        pass
    return 64 << 20  # conservative default (v7x per-core VMEM)


# --------------------------------------------------------------------------
# Single-pass kernel: whole H*W per block
#   nu2   = mean_lanes(x^2)     (Mosaic masks the physical lane padding when
#                                H*W is not a multiple of 128, since the block
#                                lane extent equals the logical array extent)
#   out   = max(x * (gamma * rsqrt(nu2 + eps)) + beta, tau)
# --------------------------------------------------------------------------
def _frn_fused_kernel(x_ref, g_ref, b_ref, t_ref, e_ref, o_ref, *, inv_hw):
    x = x_ref[...].astype(jnp.float32)                       # (rb, hw)
    nu2 = jnp.sum(x * x, axis=-1, keepdims=True) * inv_hw    # (rb, 1)
    scale = g_ref[...] * jax.lax.rsqrt(nu2 + e_ref[...])     # gamma folded in
    y = x * scale + b_ref[...]
    o_ref[...] = jnp.maximum(y, t_ref[...]).astype(o_ref.dtype)


# --------------------------------------------------------------------------
# Two-pass kernels (large H*W): pass 1 reduces sum(x^2) over H*W chunks,
# pass 2 applies the normalization.
# --------------------------------------------------------------------------
def _frn_reduce_kernel(x_ref, nu2_ref, *, hw, hw_block, inv_hw):
    j = pl.program_id(1)
    x = x_ref[...].astype(jnp.float32)                       # (rb, hw_block)
    if hw % hw_block != 0:
        # ragged tail chunk: out-of-bounds lanes of the boundary block contain
        # garbage on input; mask them out of the sum by global column index.
        col = jax.lax.broadcasted_iota(jnp.int32, x.shape, 1) + j * hw_block
        x = jnp.where(col < hw, x, 0.0)
    part = jnp.sum(x * x, axis=-1, keepdims=True)

    @pl.when(j == 0)
    def _():
        nu2_ref[...] = jnp.zeros_like(nu2_ref)

    nu2_ref[...] += part

    @pl.when(j == pl.num_programs(1) - 1)
    def _():
        nu2_ref[...] = nu2_ref[...] * inv_hw


def _frn_apply_kernel(x_ref, nu2_ref, g_ref, b_ref, t_ref, e_ref, o_ref):
    scale = g_ref[...] * jax.lax.rsqrt(nu2_ref[...] + e_ref[...])  # (rb, 1)
    y = x_ref[...].astype(jnp.float32) * scale + b_ref[...]
    o_ref[...] = jnp.maximum(y, t_ref[...]).astype(o_ref.dtype)


# --------------------------------------------------------------------------
# Block planning (generation aware)
# --------------------------------------------------------------------------
def _plan_single_pass(rows, hw, itemsize, budget, target_f32):
    """Row block for the single-pass path, or None if a row tile of the full
    H*W does not fit the VMEM budget."""
    sub = _sublane(itemsize)
    hw_lanes = _round_up(hw, _LANE)          # physical lanes per row in VMEM
    # 2x dbl-buffered in + 2x dbl-buffered out (native) + ~5 f32 temps/elem
    per_row = hw_lanes * (4 * itemsize + 5 * 4)
    avail = max(budget - (2 << 20), 1 << 20)
    rb_fit = (avail // per_row) // sub * sub
    if rb_fit < sub:
        return None
    rb_tgt = max(sub, (target_f32 // (hw_lanes * 4)) // sub * sub)
    rb = min(rb_tgt, rb_fit)
    if rb >= rows:
        return rows                          # one block covering all rows
    # v7x megacore: prefer an even number of grid steps (harmless on 1-TC chips)
    steps = -(-rows // rb)
    if steps > 1 and steps % 2 == 1:
        rb2 = _round_up(-(-rows // (steps + 1)), sub)
        if sub <= rb2 <= rb and (-(-rows // rb2)) % 2 == 0:
            rb = rb2
    return rb


def _plan_two_pass(rows, hw, itemsize, budget, target_f32, hw_block_override):
    sub = _sublane(itemsize)
    hw_lanes = _round_up(hw, _LANE)
    per_elem = 4 * itemsize + 5 * 4
    avail = max(budget - (2 << 20), 1 << 20)
    if hw_block_override is not None:
        hb = max(_LANE, _round_up(min(int(hw_block_override), hw_lanes), _LANE))
    else:
        hb = (min(target_f32 // (sub * 4), avail // (sub * per_elem)) // _LANE) * _LANE
        hb = max(512, min(hb, hw_lanes))
    rb = (min(target_f32 // (hb * 4), avail // (hb * per_elem)) // sub) * sub
    rb = max(sub, rb)
    if rb >= rows:
        rb = rows
    return rb, hb


# --------------------------------------------------------------------------
# pallas_call wrappers
# --------------------------------------------------------------------------
def _frn_single_pass(x_rows, g_r, b_r, t_r, e_r, hw, row_block, vmem_limit):
    rows, _ = x_rows.shape
    grid = (pl.cdiv(rows, row_block),)
    kernel = functools.partial(_frn_fused_kernel, inv_hw=1.0 / float(hw))

    x_spec = pl.BlockSpec((row_block, hw), lambda i: (i, 0))
    p_spec = pl.BlockSpec((row_block, 1), lambda i: (i, 0))

    return pl.pallas_call(
        kernel,
        out_shape=jax.ShapeDtypeStruct((rows, hw), x_rows.dtype),
        grid_spec=pltpu.PrefetchScalarGridSpec(
            num_scalar_prefetch=0,
            grid=grid,
            in_specs=[x_spec, p_spec, p_spec, p_spec, p_spec],
            out_specs=pl.BlockSpec((row_block, hw), lambda i: (i, 0)),
        ),
        compiler_params=pltpu.CompilerParams(
            dimension_semantics=("parallel",),
            vmem_limit_bytes=vmem_limit,
        ),
    )(x_rows, g_r, b_r, t_r, e_r)


def _frn_two_pass(x_rows, g_r, b_r, t_r, e_r, hw, row_block, hw_block, vmem_limit):
    rows, _ = x_rows.shape
    grid = (pl.cdiv(rows, row_block), pl.cdiv(hw, hw_block))

    # Pass 1: per-row sum(x^2) -> nu2 (rows, 1) f32 accumulated across chunks.
    reduce_kernel = functools.partial(
        _frn_reduce_kernel, hw=hw, hw_block=hw_block, inv_hw=1.0 / float(hw))
    nu2 = pl.pallas_call(
        reduce_kernel,
        out_shape=jax.ShapeDtypeStruct((rows, 1), jnp.float32),
        grid_spec=pltpu.PrefetchScalarGridSpec(
            num_scalar_prefetch=0,
            grid=grid,
            in_specs=[pl.BlockSpec((row_block, hw_block), lambda i, j: (i, j))],
            out_specs=pl.BlockSpec((row_block, 1), lambda i, j: (i, 0)),
        ),
        compiler_params=pltpu.CompilerParams(
            dimension_semantics=("parallel", "arbitrary"),
            vmem_limit_bytes=vmem_limit,
        ),
    )(x_rows)

    # Pass 2: stream x again and apply the normalization.
    x_spec = pl.BlockSpec((row_block, hw_block), lambda i, j: (i, j))
    p_spec = pl.BlockSpec((row_block, 1), lambda i, j: (i, 0))
    return pl.pallas_call(
        _frn_apply_kernel,
        out_shape=jax.ShapeDtypeStruct((rows, hw), x_rows.dtype),
        grid_spec=pltpu.PrefetchScalarGridSpec(
            num_scalar_prefetch=0,
            grid=grid,
            in_specs=[x_spec, p_spec, p_spec, p_spec, p_spec, p_spec],
            out_specs=pl.BlockSpec((row_block, hw_block), lambda i, j: (i, j)),
        ),
        compiler_params=pltpu.CompilerParams(
            dimension_semantics=("parallel", "parallel"),
            vmem_limit_bytes=vmem_limit,
        ),
    )(x_rows, nu2, g_r, b_r, t_r, e_r)


# --------------------------------------------------------------------------
# Bezier parameter sampling (glue, matches _sample_parameters semantics)
# --------------------------------------------------------------------------
def sample_bezier_params(gammas, betas, taus, lam, eps, eps_ls=None):
    """gammas/betas/taus: lists (len 1..3) of (C,) arrays (control points)."""
    n = len(gammas)
    if n == 1:
        w = [1.0]
    elif n == 2:
        w = [1.0 - lam, lam]
    elif n == 3:
        w = [(1.0 - lam) ** 2, 2.0 * (1.0 - lam) * lam, lam * lam]
    else:
        raise NotImplementedError()
    g = sum(wi * gi for wi, gi in zip(w, gammas))
    b = sum(wi * bi for wi, bi in zip(w, betas))
    t = sum(wi * ti for wi, ti in zip(w, taus))
    if eps_ls is None:
        e = float(eps)                       # buffer is 0 -> |0| + eps, static
    else:
        e_l = sum(wi * ei for wi, ei in zip(w, eps_ls))
        e = jnp.abs(e_l).reshape(()) + eps   # traced scalar (learnable eps)
    return g, b, t, e


# --------------------------------------------------------------------------
# Full forward: NCHW input -> NCHW output (same dtype as x)
# --------------------------------------------------------------------------
def frn2d_bezier_forward(x, gammas, betas, taus, bezier_lambda, eps=1e-6,
                         eps_ls=None, *, two_pass=None, hw_block=None):
    N, C, H, W = x.shape
    g, b, t, e = sample_bezier_params(gammas, betas, taus, bezier_lambda,
                                      eps, eps_ls)

    rows, hw = N * C, H * W
    x_rows = x.reshape(rows, hw)             # free reshape (contiguous NCHW)

    def per_row(p):                          # (C,) -> (N*C, 1), tiny
        p = jnp.asarray(p, jnp.float32).reshape(1, C)
        return jnp.broadcast_to(p, (N, C)).reshape(rows, 1)

    g_r, b_r, t_r = per_row(g), per_row(b), per_row(t)
    e_r = jnp.full((rows, 1), e, dtype=jnp.float32)   # float or traced scalar

    itemsize = jnp.dtype(x.dtype).itemsize
    capacity = _vmem_capacity_bytes()
    budget = int(min(max(capacity * 3 // 4, 32 << 20), 80 << 20))
    target_f32 = int(min(max(capacity // 10, 4 << 20), 10 << 20))

    rb_single = _plan_single_pass(rows, hw, itemsize, budget, target_f32)
    use_two_pass = (rb_single is None) if two_pass is None else bool(two_pass)

    if not use_two_pass:
        rb = rb_single if rb_single is not None else _sublane(itemsize)
        out_rows = _frn_single_pass(x_rows, g_r, b_r, t_r, e_r, hw, rb, budget)
    else:
        rb, hb = _plan_two_pass(rows, hw, itemsize, budget, target_f32, hw_block)
        out_rows = _frn_two_pass(x_rows, g_r, b_r, t_r, e_r, hw, rb, hb, budget)
    return out_rows.reshape(N, C, H, W)


# --------------------------------------------------------------------------
# Pure JAX reference (mirrors the PyTorch _norm_forward)
# --------------------------------------------------------------------------
def frn2d_bezier_reference(x, gammas, betas, taus, bezier_lambda,
                           eps=1e-6, eps_ls=None):
    g, b, t, e = sample_bezier_params(gammas, betas, taus, bezier_lambda,
                                      eps, eps_ls)
    C = x.shape[1]
    g = jnp.asarray(g, jnp.float32).reshape(1, C, 1, 1)
    b = jnp.asarray(b, jnp.float32).reshape(1, C, 1, 1)
    t = jnp.asarray(t, jnp.float32).reshape(1, C, 1, 1)
    xf = x.astype(jnp.float32)
    nu2 = jnp.mean(xf * xf, axis=(2, 3), keepdims=True)
    y = g * (xf * jax.lax.rsqrt(nu2 + e)) + b
    return jnp.maximum(y, t).astype(x.dtype)


if __name__ == "__main__":
    key = jax.random.PRNGKey(0)

    def make_ctrl_points(k, C, n_points):
        ks = jax.random.split(k, max(3 * n_points, 3))
        # point 0 follows reset_parameters(); later points are perturbations so
        # the Bezier blend is non-trivial.
        gammas = [jnp.ones((C,), jnp.float32)]
        betas = [jnp.zeros((C,), jnp.float32)]
        taus = [jnp.zeros((C,), jnp.float32)]
        for i in range(1, n_points):
            gammas.append(1.0 + 0.1 * jax.random.normal(ks[3 * i], (C,), jnp.float32))
            betas.append(0.1 * jax.random.normal(ks[3 * i + 1], (C,), jnp.float32))
            taus.append(0.1 * jax.random.normal(ks[3 * i + 2], (C,), jnp.float32))
        return gammas, betas, taus

    def check(shape, n_points, lam, k, **kw):
        kx, kp = jax.random.split(k)
        N, C, H, W = shape
        x = jax.random.normal(kx, shape, jnp.float32)
        gammas, betas, taus = make_ctrl_points(kp, C, n_points)
        out = frn2d_bezier_forward(x, gammas, betas, taus, lam, eps=1e-6, **kw)
        out = jax.block_until_ready(out)
        ref = frn2d_bezier_reference(x, gammas, betas, taus, lam, eps=1e-6)
        assert out.shape == shape and out.dtype == x.dtype
        assert jnp.allclose(out, ref, atol=1e-5, rtol=1e-5), f"mismatch for {shape}"

    k1, k2, k3 = jax.random.split(key, 3)
    # 1) aligned shape (H*W=256, N*C=8): single-pass, 1 read + 1 write of x.
    check((2, 4, 16, 16), 3, 0.3, k1)
    # 2) ragged H*W (196, not a multiple of 128): single-pass, no wrapper pad/slice.
    check((2, 4, 14, 14), 2, 0.7, k2)
    # 3) two-pass (split H*W) path, forced with a small H*W chunk to exercise the
    #    cross-chunk sum(x^2) accumulator + finalize.
    check((2, 8, 32, 32), 3, 0.5, k3, two_pass=True, hw_block=512)

    print("KERNEL_OK")
</pallas_src>

<mosaic_0001>
module attributes {stable_mosaic.version = 11 : i64} {
  func.func @_frn_fused_kernel(%arg0: i32, %arg1: memref<8x256xf32, #tpu.memory_space<vmem>>, %arg2: memref<8x1xf32, #tpu.memory_space<vmem>>, %arg3: memref<8x1xf32, #tpu.memory_space<vmem>>, %arg4: memref<8x1xf32, #tpu.memory_space<vmem>>, %arg5: memref<8x1xf32, #tpu.memory_space<vmem>>, %arg6: memref<8x256xf32, #tpu.memory_space<vmem>>) attributes {dimension_semantics = [#tpu.dimension_semantics<parallel>], iteration_bounds = array<i64: 1>, scalar_prefetch = 0 : i64, scratch_operands = 0 : i64, tpu.core_type = #tpu.core_type<tc>, window_params = [{transform_indices = @transform_0, window_bounds = array<i64: 8, 256>}, {transform_indices = @transform_1, window_bounds = array<i64: 8, 1>}, {transform_indices = @transform_2, window_bounds = array<i64: 8, 1>}, {transform_indices = @transform_3, window_bounds = array<i64: 8, 1>}, {transform_indices = @transform_4, window_bounds = array<i64: 8, 1>}, {transform_indices = @transform_5, window_bounds = array<i64: 8, 256>}]} {
    %c0 = arith.constant 0 : index
    %c0_0 = arith.constant 0 : index
    %0 = vector.load %arg1[%c0, %c0_0] : memref<8x256xf32, #tpu.memory_space<vmem>>, vector<8x256xf32>
    %1 = arith.mulf %0, %0 : vector<8x256xf32>
    %cst = arith.constant dense<0.000000e+00> : vector<8xf32>
    %2 = vector.multi_reduction <add>, %1, %cst [1] : vector<8x256xf32> to vector<8xf32>
    %3 = vector.shape_cast %2 : vector<8xf32> to vector<8x1xf32>
    %cst_1 = arith.constant 3.906250e-03 : f32
    %4 = vector.broadcast %cst_1 : f32 to vector<8x1xf32>
    %5 = arith.mulf %3, %4 : vector<8x1xf32>
    %c0_2 = arith.constant 0 : index
    %c0_3 = arith.constant 0 : index
    %6 = vector.load %arg2[%c0_2, %c0_3] : memref<8x1xf32, #tpu.memory_space<vmem>>, vector<8x1xf32>
    %c0_4 = arith.constant 0 : index
    %c0_5 = arith.constant 0 : index
    %7 = vector.load %arg5[%c0_4, %c0_5] : memref<8x1xf32, #tpu.memory_space<vmem>>, vector<8x1xf32>
    %8 = arith.addf %5, %7 : vector<8x1xf32>
    %9 = math.rsqrt %8 : vector<8x1xf32>
    %10 = arith.mulf %6, %9 : vector<8x1xf32>
    %11 = vector.broadcast %10 : vector<8x1xf32> to vector<8x256xf32>
    %12 = arith.mulf %0, %11 : vector<8x256xf32>
    %c0_6 = arith.constant 0 : index
    %c0_7 = arith.constant 0 : index
    %13 = vector.load %arg3[%c0_6, %c0_7] : memref<8x1xf32, #tpu.memory_space<vmem>>, vector<8x1xf32>
    %14 = vector.broadcast %13 : vector<8x1xf32> to vector<8x256xf32>
    %15 = arith.addf %12, %14 : vector<8x256xf32>
    %c0_8 = arith.constant 0 : index
    %c0_9 = arith.constant 0 : index
    %16 = vector.load %arg4[%c0_8, %c0_9] : memref<8x1xf32, #tpu.memory_space<vmem>>, vector<8x1xf32>
    %17 = vector.broadcast %16 : vector<8x1xf32> to vector<8x256xf32>
    %18 = arith.maximumf %15, %17 : vector<8x256xf32>
    %c0_10 = arith.constant 0 : index
    %c0_11 = arith.constant 0 : index
    %19 = vector.load %arg6[%c0_10, %c0_11] : memref<8x256xf32, #tpu.memory_space<vmem>>, vector<8x256xf32>
    tpu.vector_store %arg6[%c0_10, %c0_11], %18 {strides = array<i32>} : memref<8x256xf32, #tpu.memory_space<vmem>>, vector<8x256xf32>,
    return
  }
  func.func @transform_0(%arg0: i32) -> (i32, i32) {
    %c0_i32 = arith.constant 0 : i32
    %c0_i32_0 = arith.constant 0 : i32
    return %arg0, %c0_i32 : i32, i32
  }
  func.func @transform_1(%arg0: i32) -> (i32, i32) {
    %c0_i32 = arith.constant 0 : i32
    %c0_i32_0 = arith.constant 0 : i32
    return %arg0, %c0_i32 : i32, i32
  }
  func.func @transform_2(%arg0: i32) -> (i32, i32) {
    %c0_i32 = arith.constant 0 : i32
    %c0_i32_0 = arith.constant 0 : i32
    return %arg0, %c0_i32 : i32, i32
  }
  func.func @transform_3(%arg0: i32) -> (i32, i32) {
    %c0_i32 = arith.constant 0 : i32
    %c0_i32_0 = arith.constant 0 : i32
    return %arg0, %c0_i32 : i32, i32
  }
  func.func @transform_4(%arg0: i32) -> (i32, i32) {
    %c0_i32 = arith.constant 0 : i32
    %c0_i32_0 = arith.constant 0 : i32
    return %arg0, %c0_i32 : i32, i32
  }
  func.func @transform_5(%arg0: i32) -> (i32, i32) {
    %c0_i32 = arith.constant 0 : i32
    %c0_i32_0 = arith.constant 0 : i32
    return %arg0, %c0_i32 : i32, i32
  }
}

</mosaic_0001>

<llo_original>
// kernel: tpu_custom_call.1
$region0: #{tpu_custom_call.1}
  #allocation0 [shape = 'u32[]', space=smem, size = 0x4, offset = 0x4, fixed_abs, tag = 'smem constant byte address 0x4 - core index']
  #allocation1 [shape = 'u32[144,128]{1,0:T(1,128)}', space=vmem, size = 0x12000, scoped, tag = 'internal scratch']
  %s0 = inlined_call_operand.vmem [shape: f32[8,256], index: 0, kind: input, shape index: {}]
  %s1 = inlined_call_operand.vmem [shape: f32[8,1], index: 1, kind: input, shape index: {}]
  %s2 = inlined_call_operand.vmem [shape: f32[8,1], index: 2, kind: input, shape index: {}]
  %s3 = inlined_call_operand.vmem [shape: f32[8,1], index: 3, kind: input, shape index: {}]
  %s4 = inlined_call_operand.vmem [shape: f32[8,1], index: 4, kind: input, shape index: {}]
  %s5 = inlined_call_operand.hbm [shape: f32[8,256], index: 5, kind: output, shape index: {}]
  %s6 = sld [smem:[#allocation0]]
  $region30: #{tpu_custom_call.1} parent=0
    _
  %s8 = ssub.s32 1, %s6
  %s9 = scalar_select 0, %s8, %s6
  $region1: #{tpu_custom_call.1} parent=0
    #allocation2 [shape = 'u8[8192]{0}', space=vmem, size = 0x2000, scoped, tag = 'output window, operand 0, single buffered']
    #allocation3 [shape = 's32[1]{0}', space=sflag, size = 0x4, scoped, tag = 'scoped memory for tpu_custom_call.1']
    %10 = vsyncpa [#allocation3], 0
    // Predicated region
    $region2: #{tpu_custom_call.1} parent=1 // pred_check
      _
    $region3: #{tpu_custom_call.1} parent=1 // pred_check_branch
      %12 = sbr.rel (0) target = $region5
    $region4: #{tpu_custom_call.1} parent=1 // pred_region
      _
    $region5: #{tpu_custom_call.1} parent=1 // pred_fallthru
      _
    // Predicated region
    $region6: #{tpu_custom_call.1} parent=1 // pred_check
      _
    $region7: #{tpu_custom_call.1} parent=1 // pred_check_branch
      %14 = sbr.rel (0) target = $region9
    $region8: #{tpu_custom_call.1} parent=1 // pred_region
      _
    $region9: #{tpu_custom_call.1} parent=1 // pred_fallthru
      _
    // Predicated region
    $region10: #{tpu_custom_call.1} parent=1 // pred_check
      _
    $region11: #{tpu_custom_call.1} parent=1 // pred_check_branch
      %16 = sbr.rel (0) target = $region13
    $region12: #{tpu_custom_call.1} parent=1 // pred_region
      _
    $region13: #{tpu_custom_call.1} parent=1 // pred_fallthru
      _
    // Predicated region
    $region14: #{tpu_custom_call.1} parent=1 // pred_check
      _
    $region15: #{tpu_custom_call.1} parent=1 // pred_check_branch
      %18 = sbr.rel (0) target = $region17
    $region16: #{tpu_custom_call.1} parent=1 // pred_region
      _
    $region17: #{tpu_custom_call.1} parent=1 // pred_fallthru
      _
    // Predicated region
    $region18: #{tpu_custom_call.1} parent=1 // pred_check
      _
    $region19: #{tpu_custom_call.1} parent=1 // pred_check_branch
      %20 = sbr.rel (0) target = $region21
    $region20: #{tpu_custom_call.1} parent=1 // pred_region
      _
    $region21: #{tpu_custom_call.1} parent=1 // pred_fallthru
      _
    %v21 = vld [vmem:[%s0] sm:$0xff]
    %v22 = vld [vmem:[%s0 + $0x8] sm:$0xff]
    %v23 = vmul.f32 %v21, %v21
    %v24 = vmul.f32 %v22, %v22
    %v25 = vadd.f32 %v23, %v24
    %26 = vadd.xlane.f32.xlu0 %v25
    %v27 = vpop.xlane.xlu0 %26
    %v28 = vmul.f32 %v27, 0.00390625
    %v29 = vld [vmem:[%s1] sm:$0xff]
    %v30 = vld [vmem:[%s4] sm:$0xff]
    %v31 = vadd.f32 %v28, %v30
    %v32 = vrsqrt.pop %v31
    %v33 = vmul.f32 %v29, %v32
    %35 = vset.pattern.permute.xlu0 0
    %36 = vperm.xlu0 %35, %v33
    %v37 = vpop.permute.xlu0 %36
    %v39 = vmul.f32 %v21, %v37
    %v40 = vmul.f32 %v22, %v37
    %v41 = vld [vmem:[%s2] sm:$0xff]
    %43 = vset.pattern.permute.xlu0 0
    %44 = vperm.xlu0 %43, %v41
    %v45 = vpop.permute.xlu0 %44
    %v47 = vadd.f32 %v39, %v45
    %v48 = vadd.f32 %v40, %v45
    %v49 = vld [vmem:[%s3] sm:$0xff]
    %51 = vset.pattern.permute.xlu0 0
    %52 = vperm.xlu0 %51, %v49
    %v53 = vpop.permute.xlu0 %52
    %v55 = vmax.f32 %v47, %v53
    %v56 = vmax.f32 %v48, %v53
    %57 = vst [vmem:[#allocation2] sm:$0xff] %v55
    %58 = vst [vmem:[#allocation2 + $0x8] sm:$0xff] %v56
    // Predicated region
    $region22: #{tpu_custom_call.1} parent=1 // pred_check
      _
    $region23: #{tpu_custom_call.1} parent=1 // pred_check_branch
      %60 = sbr.rel (0) target = $region25
    $region24: #{tpu_custom_call.1} parent=1 // pred_region
      %s62 = ssub.s32 256, 256
      %63 = vsyncadd [#allocation3], %s62
      %s65 = sshll.u32 [#allocation2], 4
      %s66 = int_to_ptr.vmem [resolvable:$true] %s65
      %68 = dma.vmem_to_hbm [thread:$0]  %s66, 256, %s5, [#allocation3]
    $region25: #{tpu_custom_call.1} parent=1 // pred_fallthru
      _
    // Predicated region
    $region26: #{tpu_custom_call.1} parent=1 // pred_check
      _
    $region27: #{tpu_custom_call.1} parent=1 // pred_check_branch
      %70 = sbr.rel (0) target = $region29
    $region28: #{tpu_custom_call.1} parent=1 // pred_region
      %71 = dma.done [#allocation3], 256
    $region29: #{tpu_custom_call.1} parent=1 // pred_fallthru
      _
    %72 = vsyncpa [#allocation3], 1

</llo_original>
